<compile_context>
chip_gen: v7x
topology: tpu7x:2x2x1
jax: 0.10.0
libtpu: 0.0.40
codegen_flags: <defaults>
</compile_context>

<pallas_src>
import functools

import jax
import jax.numpy as jnp
from jax.experimental import pallas as pl
from jax.experimental.pallas import tpu as pltpu

EPSILON = 1e-05


def _pick_tile(dim, target, align):
    """Largest tile <= target that divides dim and is a multiple of align.

    Falls back to the full extent (always a legal block shape)."""
    if dim <= target:
        return dim
    start = (target // align) * align
    for t in range(start, align - 1, -align):
        if dim % t == 0:
            return t
    return dim


def _stats_kernel(n_total, tile_rows,
                  x_ref, rmean_ref, rvar_ref, count_ref,
                  new_mean_ref, new_var_ref, inv_std_ref,
                  mean_acc, m2_acc):
    """Per-feature batch stats over tiles of N, merged with running stats."""
    i = pl.program_id(1)                 # N-tile index (reduction axis)
    last = pl.num_programs(1) - 1

    x = x_ref[...].astype(jnp.float32)   # (TN, TD)
    tn = jnp.float32(tile_rows)

    tile_mean = jnp.mean(x, axis=0, keepdims=True)          # (1, TD)
    centered = x - tile_mean
    tile_m2 = jnp.sum(centered * centered, axis=0, keepdims=True)  # (1, TD)

    @pl.when(i == 0)
    def _():
        mean_acc[...] = tile_mean
        m2_acc[...] = tile_m2

    @pl.when(i > 0)
    def _():
        # Chan combine: accumulator (count = i*TN) with this tile (count = TN).
        cnt_a = (i * tile_rows).astype(jnp.float32)
        tot = cnt_a + tn
        delta = tile_mean - mean_acc[...]
        m2_acc[...] = (m2_acc[...] + tile_m2
                       + delta * delta * (cnt_a * tn / tot))
        mean_acc[...] = mean_acc[...] + delta * (tn / tot)

    @pl.when(i == last)
    def _():
        batch_count = jnp.float32(n_total)
        batch_mean = mean_acc[...]
        batch_var = m2_acc[...] / batch_count

        mean = rmean_ref[...]
        var = rvar_ref[...]
        count = count_ref[0, 0]

        # update_mean_var_count_from_moments
        delta = batch_mean - mean
        tot = count + batch_count
        new_mean = mean + delta * (batch_count / tot)
        m2 = (var * count + batch_var * batch_count
              + delta * delta * (count * batch_count / tot))
        new_var = m2 / tot

        new_mean_ref[...] = new_mean
        new_var_ref[...] = new_var
        inv_std_ref[...] = jax.lax.rsqrt(new_var + EPSILON)


def _normalize_kernel(x_ref, mean_ref, inv_std_ref, y_ref):
    """Elementwise y = (x - new_mean) * inv_std with the hoisted rsqrt."""
    x = x_ref[...].astype(jnp.float32)
    y_ref[...] = ((x - mean_ref[...]) * inv_std_ref[...]).astype(y_ref.dtype)


def running_mean_std_forward(x, running_mean, running_var, count,
                             *, tile_n=None, tile_d=None):
    """Training-mode forward of RunningMeanStd.

    Args:
      x: (N, D) float array (batch, features).
      running_mean, running_var: (D,) buffers.
      count: scalar (python float or jnp scalar).
    Returns:
      y (N, D), new_running_mean (D,), new_running_var (D,), new_count (scalar)
    """
    n, d = x.shape
    rmean = running_mean.reshape(1, d).astype(jnp.float32)
    rvar = running_var.reshape(1, d).astype(jnp.float32)
    cnt = jnp.asarray(count, dtype=jnp.float32).reshape(1, 1)

    tn = tile_n if tile_n is not None else _pick_tile(n, 512, 8)
    td = tile_d if tile_d is not None else _pick_tile(d, 1024, 128)
    assert n % tn == 0 and d % td == 0, "tiles must divide the array dims"
    n_tiles = n // tn
    d_tiles = d // td

    # ---- phase A: batch stats (tiled over N) + Chan merge with running stats
    new_mean, new_var, inv_std = pl.pallas_call(
        functools.partial(_stats_kernel, n, tn),
        grid=(d_tiles, n_tiles),
        in_specs=[
            pl.BlockSpec((tn, td), lambda j, i: (i, j)),        # x
            pl.BlockSpec((1, td), lambda j, i: (0, j)),         # running_mean
            pl.BlockSpec((1, td), lambda j, i: (0, j)),         # running_var
            pl.BlockSpec((1, 1), lambda j, i: (0, 0),
                         memory_space=pltpu.MemorySpace.SMEM),   # count
        ],
        out_specs=[
            pl.BlockSpec((1, td), lambda j, i: (0, j)),         # new_mean
            pl.BlockSpec((1, td), lambda j, i: (0, j)),         # new_var
            pl.BlockSpec((1, td), lambda j, i: (0, j)),         # inv_std
        ],
        out_shape=(
            jax.ShapeDtypeStruct((1, d), jnp.float32),
            jax.ShapeDtypeStruct((1, d), jnp.float32),
            jax.ShapeDtypeStruct((1, d), jnp.float32),
        ),
        scratch_shapes=[
            pltpu.VMEM((1, td), jnp.float32),   # mean accumulator
            pltpu.VMEM((1, td), jnp.float32),   # M2 accumulator
        ],
        compiler_params=pltpu.CompilerParams(
            dimension_semantics=("parallel", "arbitrary")),
    )(x, rmean, rvar, cnt)

    # ---- phase B: fully pipelined elementwise normalize
    y = pl.pallas_call(
        _normalize_kernel,
        grid=(d_tiles, n_tiles),
        in_specs=[
            pl.BlockSpec((tn, td), lambda j, i: (i, j)),        # x
            pl.BlockSpec((1, td), lambda j, i: (0, j)),         # new_mean
            pl.BlockSpec((1, td), lambda j, i: (0, j)),         # inv_std
        ],
        out_specs=pl.BlockSpec((tn, td), lambda j, i: (i, j)),
        out_shape=jax.ShapeDtypeStruct((n, d), x.dtype),
        compiler_params=pltpu.CompilerParams(
            dimension_semantics=("parallel", "parallel")),
    )(x, new_mean, inv_std)

    # new_count is statically derivable (count + batch_count); keep on host.
    new_count = jnp.asarray(count, jnp.float32) + jnp.float32(n)
    return y, new_mean.reshape(d), new_var.reshape(d), new_count


def _reference_forward(x, running_mean, running_var, count):
    """Pure-JAX reference mirroring the PyTorch module exactly."""
    x32 = x.astype(jnp.float32)
    batch_mean = jnp.mean(x32, axis=0)
    batch_var = jnp.var(x32, axis=0)  # ddof=0 == unbiased=False
    batch_count = jnp.float32(x.shape[0])
    delta = batch_mean - running_mean
    tot = count + batch_count
    new_mean = running_mean + delta * batch_count / tot
    m2 = running_var * count + batch_var * batch_count + \
        jnp.square(delta) * count * batch_count / tot
    new_var = m2 / tot
    y = (x32 - new_mean) / jnp.sqrt(new_var + EPSILON)
    return y.astype(x.dtype), new_mean, new_var, tot


if __name__ == "__main__":
    # RunningMeanStd(shape=(D,)) applied to x of shape (N, D)
    N, D = 32, 128
    key = jax.random.PRNGKey(0)
    x = jax.random.normal(key, (N, D), dtype=jnp.float32) * 3.0 + 1.5

    # deterministic buffer init per __init__: zeros / ones, count = 1000.0
    running_mean = jnp.zeros((D,), dtype=jnp.float32)
    running_var = jnp.ones((D,), dtype=jnp.float32)
    count = 1000.0

    # force a multi-tile grid over N (4 tiles of 8 rows) so the cross-tile
    # Chan combine path is exercised; D is a single lane-dense 128 tile.
    y, new_mean, new_var, new_count = running_mean_std_forward(
        x, running_mean, running_var, count, tile_n=8, tile_d=128)
    jax.block_until_ready((y, new_mean, new_var, new_count))

    # sanity check against pure-JAX reference
    y_ref, m_ref, v_ref, c_ref = _reference_forward(
        x, running_mean, running_var, jnp.float32(count))
    assert jnp.allclose(y, y_ref, atol=1e-5, rtol=1e-5)
    assert jnp.allclose(new_mean, m_ref, atol=1e-5, rtol=1e-5)
    assert jnp.allclose(new_var, v_ref, atol=1e-5, rtol=1e-5)
    assert jnp.allclose(new_count, c_ref)

    print("KERNEL_OK")
</pallas_src>

<mosaic_0001>
module attributes {stable_mosaic.version = 11 : i64} {
  func.func @_stats_kernel(%arg0: i32, %arg1: i32, %arg2: memref<8x128xf32, #tpu.memory_space<vmem>>, %arg3: memref<1x128xf32, #tpu.memory_space<vmem>>, %arg4: memref<1x128xf32, #tpu.memory_space<vmem>>, %arg5: memref<1x1xf32, #tpu.memory_space<smem>>, %arg6: memref<1x128xf32, #tpu.memory_space<vmem>>, %arg7: memref<1x128xf32, #tpu.memory_space<vmem>>, %arg8: memref<1x128xf32, #tpu.memory_space<vmem>>, %arg9: memref<1x128xf32, #tpu.memory_space<vmem>>, %arg10: memref<1x128xf32, #tpu.memory_space<vmem>>) attributes {dimension_semantics = [#tpu.dimension_semantics<parallel>, #tpu.dimension_semantics<arbitrary>], iteration_bounds = array<i64: 1, 4>, scalar_prefetch = 0 : i64, scratch_operands = 2 : i64, tpu.core_type = #tpu.core_type<tc>, window_params = [{transform_indices = @transform_0, window_bounds = array<i64: 8, 128>}, {transform_indices = @transform_1, window_bounds = array<i64: 1, 128>}, {transform_indices = @transform_2, window_bounds = array<i64: 1, 128>}, {transform_indices = @transform_3, window_bounds = array<i64: 1, 1>}, {transform_indices = @transform_4, window_bounds = array<i64: 1, 128>}, {transform_indices = @transform_5, window_bounds = array<i64: 1, 128>}, {transform_indices = @transform_6, window_bounds = array<i64: 1, 128>}]} {
    %c0 = arith.constant 0 : index
    %c0_0 = arith.constant 0 : index
    %0 = vector.load %arg2[%c0, %c0_0] : memref<8x128xf32, #tpu.memory_space<vmem>>, vector<8x128xf32>
    %cst = arith.constant dense<0.000000e+00> : vector<128xf32>
    %1 = vector.multi_reduction <add>, %0, %cst [0] : vector<8x128xf32> to vector<128xf32>
    %2 = vector.shape_cast %1 : vector<128xf32> to vector<1x128xf32>
    %cst_1 = arith.constant 8.000000e+00 : f32
    %3 = vector.broadcast %cst_1 : f32 to vector<1x128xf32>
    %4 = arith.divf %2, %3 : vector<1x128xf32>
    %5 = vector.broadcast %4 : vector<1x128xf32> to vector<8x128xf32>
    %6 = arith.subf %0, %5 : vector<8x128xf32>
    %7 = arith.mulf %6, %6 : vector<8x128xf32>
    %cst_2 = arith.constant dense<0.000000e+00> : vector<128xf32>
    %8 = vector.multi_reduction <add>, %7, %cst_2 [0] : vector<8x128xf32> to vector<128xf32>
    %9 = vector.shape_cast %8 : vector<128xf32> to vector<1x128xf32>
    %c0_i32 = arith.constant 0 : i32
    %10 = arith.cmpi eq, %arg1, %c0_i32 : i32
    %11 = arith.extui %10 : i1 to i32
    %c0_i32_3 = arith.constant 0 : i32
    %12 = arith.cmpi ne, %11, %c0_i32_3 : i32
    scf.if %12 {
      %c0_8 = arith.constant 0 : index
      %c0_9 = arith.constant 0 : index
      %19 = vector.load %arg9[%c0_8, %c0_9] : memref<1x128xf32, #tpu.memory_space<vmem>>, vector<1x128xf32>
      tpu.vector_store %arg9[%c0_8, %c0_9], %4 {strides = array<i32>} : memref<1x128xf32, #tpu.memory_space<vmem>>, vector<1x128xf32>,
      %c0_10 = arith.constant 0 : index
      %c0_11 = arith.constant 0 : index
      %20 = vector.load %arg10[%c0_10, %c0_11] : memref<1x128xf32, #tpu.memory_space<vmem>>, vector<1x128xf32>
      tpu.vector_store %arg10[%c0_10, %c0_11], %9 {strides = array<i32>} : memref<1x128xf32, #tpu.memory_space<vmem>>, vector<1x128xf32>,
    } else {
    }
    %c0_i32_4 = arith.constant 0 : i32
    %13 = arith.cmpi sgt, %arg1, %c0_i32_4 : i32
    %14 = arith.extui %13 : i1 to i32
    %cst_5 = arith.constant 8.000000e+00 : f32
    %c0_i32_6 = arith.constant 0 : i32
    %15 = arith.cmpi ne, %14, %c0_i32_6 : i32
    scf.if %15 {
      %c8_i32 = arith.constant 8 : i32
      %19 = arith.muli %arg1, %c8_i32 : i32
      %20 = arith.sitofp %19 : i32 to f32
      %21 = arith.addf %20, %cst_5 : f32
      %c0_8 = arith.constant 0 : index
      %c0_9 = arith.constant 0 : index
      %22 = vector.load %arg9[%c0_8, %c0_9] : memref<1x128xf32, #tpu.memory_space<vmem>>, vector<1x128xf32>
      %23 = arith.subf %4, %22 : vector<1x128xf32>
      %c0_10 = arith.constant 0 : index
      %c0_11 = arith.constant 0 : index
      %24 = vector.load %arg10[%c0_10, %c0_11] : memref<1x128xf32, #tpu.memory_space<vmem>>, vector<1x128xf32>
      %25 = arith.addf %24, %9 : vector<1x128xf32>
      %26 = arith.mulf %23, %23 : vector<1x128xf32>
      %27 = arith.mulf %20, %cst_5 : f32
      %28 = arith.divf %27, %21 : f32
      %29 = vector.broadcast %28 : f32 to vector<1x128xf32>
      %30 = arith.mulf %26, %29 : vector<1x128xf32>
      %31 = arith.addf %25, %30 : vector<1x128xf32>
      %c0_12 = arith.constant 0 : index
      %c0_13 = arith.constant 0 : index
      %32 = vector.load %arg10[%c0_12, %c0_13] : memref<1x128xf32, #tpu.memory_space<vmem>>, vector<1x128xf32>
      tpu.vector_store %arg10[%c0_12, %c0_13], %31 {strides = array<i32>} : memref<1x128xf32, #tpu.memory_space<vmem>>, vector<1x128xf32>,
      %c0_14 = arith.constant 0 : index
      %c0_15 = arith.constant 0 : index
      %33 = vector.load %arg9[%c0_14, %c0_15] : memref<1x128xf32, #tpu.memory_space<vmem>>, vector<1x128xf32>
      %34 = arith.divf %cst_5, %21 : f32
      %35 = vector.broadcast %34 : f32 to vector<1x128xf32>
      %36 = arith.mulf %23, %35 : vector<1x128xf32>
      %37 = arith.addf %33, %36 : vector<1x128xf32>
      %c0_16 = arith.constant 0 : index
      %c0_17 = arith.constant 0 : index
      %38 = vector.load %arg9[%c0_16, %c0_17] : memref<1x128xf32, #tpu.memory_space<vmem>>, vector<1x128xf32>
      tpu.vector_store %arg9[%c0_16, %c0_17], %37 {strides = array<i32>} : memref<1x128xf32, #tpu.memory_space<vmem>>, vector<1x128xf32>,
    } else {
    }
    %c3_i32 = arith.constant 3 : i32
    %16 = arith.cmpi eq, %arg1, %c3_i32 : i32
    %17 = arith.extui %16 : i1 to i32
    %c0_i32_7 = arith.constant 0 : i32
    %18 = arith.cmpi ne, %17, %c0_i32_7 : i32
    scf.if %18 {
      %c0_8 = arith.constant 0 : index
      %c0_9 = arith.constant 0 : index
      %19 = vector.load %arg9[%c0_8, %c0_9] : memref<1x128xf32, #tpu.memory_space<vmem>>, vector<1x128xf32>
      %c0_10 = arith.constant 0 : index
      %c0_11 = arith.constant 0 : index
      %20 = vector.load %arg10[%c0_10, %c0_11] : memref<1x128xf32, #tpu.memory_space<vmem>>, vector<1x128xf32>
      %cst_12 = arith.constant 3.200000e+01 : f32
      %21 = vector.broadcast %cst_12 : f32 to vector<1x128xf32>
      %22 = arith.divf %20, %21 : vector<1x128xf32>
      %c0_13 = arith.constant 0 : index
      %c0_14 = arith.constant 0 : index
      %23 = vector.load %arg3[%c0_13, %c0_14] : memref<1x128xf32, #tpu.memory_space<vmem>>, vector<1x128xf32>
      %c0_15 = arith.constant 0 : index
      %c0_16 = arith.constant 0 : index
      %24 = vector.load %arg4[%c0_15, %c0_16] : memref<1x128xf32, #tpu.memory_space<vmem>>, vector<1x128xf32>
      %c0_17 = arith.constant 0 : index
      %c0_18 = arith.constant 0 : index
      %25 = memref.load %arg5[%c0_17, %c0_18] : memref<1x1xf32, #tpu.memory_space<smem>>
      %26 = arith.subf %19, %23 : vector<1x128xf32>
      %cst_19 = arith.constant 3.200000e+01 : f32
      %27 = arith.addf %25, %cst_19 : f32
      %cst_20 = arith.constant 3.200000e+01 : f32
      %28 = arith.divf %cst_20, %27 : f32
      %29 = vector.broadcast %28 : f32 to vector<1x128xf32>
      %30 = arith.mulf %26, %29 : vector<1x128xf32>
      %31 = arith.addf %23, %30 : vector<1x128xf32>
      %32 = vector.broadcast %25 : f32 to vector<1x128xf32>
      %33 = arith.mulf %24, %32 : vector<1x128xf32>
      %cst_21 = arith.constant 3.200000e+01 : f32
      %34 = vector.broadcast %cst_21 : f32 to vector<1x128xf32>
      %35 = arith.mulf %22, %34 : vector<1x128xf32>
      %36 = arith.addf %33, %35 : vector<1x128xf32>
      %37 = arith.mulf %26, %26 : vector<1x128xf32>
      %cst_22 = arith.constant 3.200000e+01 : f32
      %38 = arith.mulf %25, %cst_22 : f32
      %39 = arith.divf %38, %27 : f32
      %40 = vector.broadcast %39 : f32 to vector<1x128xf32>
      %41 = arith.mulf %37, %40 : vector<1x128xf32>
      %42 = arith.addf %36, %41 : vector<1x128xf32>
      %43 = vector.broadcast %27 : f32 to vector<1x128xf32>
      %44 = arith.divf %42, %43 : vector<1x128xf32>
      %c0_23 = arith.constant 0 : index
      %c0_24 = arith.constant 0 : index
      %45 = vector.load %arg6[%c0_23, %c0_24] : memref<1x128xf32, #tpu.memory_space<vmem>>, vector<1x128xf32>
      tpu.vector_store %arg6[%c0_23, %c0_24], %31 {strides = array<i32>} : memref<1x128xf32, #tpu.memory_space<vmem>>, vector<1x128xf32>,
      %c0_25 = arith.constant 0 : index
      %c0_26 = arith.constant 0 : index
      %46 = vector.load %arg7[%c0_25, %c0_26] : memref<1x128xf32, #tpu.memory_space<vmem>>, vector<1x128xf32>
      tpu.vector_store %arg7[%c0_25, %c0_26], %44 {strides = array<i32>} : memref<1x128xf32, #tpu.memory_space<vmem>>, vector<1x128xf32>,
      %cst_27 = arith.constant 9.99999974E-6 : f32
      %47 = vector.broadcast %cst_27 : f32 to vector<1x128xf32>
      %48 = arith.addf %44, %47 : vector<1x128xf32>
      %49 = math.rsqrt %48 : vector<1x128xf32>
      %c0_28 = arith.constant 0 : index
      %c0_29 = arith.constant 0 : index
      %50 = vector.load %arg8[%c0_28, %c0_29] : memref<1x128xf32, #tpu.memory_space<vmem>>, vector<1x128xf32>
      tpu.vector_store %arg8[%c0_28, %c0_29], %49 {strides = array<i32>} : memref<1x128xf32, #tpu.memory_space<vmem>>, vector<1x128xf32>,
    } else {
    }
    return
  }
  func.func @transform_0(%arg0: i32, %arg1: i32) -> (i32, i32) {
    %c0_i32 = arith.constant 0 : i32
    return %arg1, %arg0 : i32, i32
  }
  func.func @transform_1(%arg0: i32, %arg1: i32) -> (i32, i32) {
    %c0_i32 = arith.constant 0 : i32
    %c0_i32_0 = arith.constant 0 : i32
    return %c0_i32, %arg0 : i32, i32
  }
  func.func @transform_2(%arg0: i32, %arg1: i32) -> (i32, i32) {
    %c0_i32 = arith.constant 0 : i32
    %c0_i32_0 = arith.constant 0 : i32
    return %c0_i32, %arg0 : i32, i32
  }
  func.func @transform_3(%arg0: i32, %arg1: i32) -> (i32, i32) {
    %c0_i32 = arith.constant 0 : i32
    %c0_i32_0 = arith.constant 0 : i32
    %c0_i32_1 = arith.constant 0 : i32
    return %c0_i32, %c0_i32_0 : i32, i32
  }
  func.func @transform_4(%arg0: i32, %arg1: i32) -> (i32, i32) {
    %c0_i32 = arith.constant 0 : i32
    %c0_i32_0 = arith.constant 0 : i32
    return %c0_i32, %arg0 : i32, i32
  }
  func.func @transform_5(%arg0: i32, %arg1: i32) -> (i32, i32) {
    %c0_i32 = arith.constant 0 : i32
    %c0_i32_0 = arith.constant 0 : i32
    return %c0_i32, %arg0 : i32, i32
  }
  func.func @transform_6(%arg0: i32, %arg1: i32) -> (i32, i32) {
    %c0_i32 = arith.constant 0 : i32
    %c0_i32_0 = arith.constant 0 : i32
    return %c0_i32, %arg0 : i32, i32
  }
}

</mosaic_0001>

<llo_original>
// kernel: tpu_custom_call.1
$region0: #{tpu_custom_call.1}
  #allocation0 [shape = 'u32[]', space=smem, size = 0x4, offset = 0x4, fixed_abs, tag = 'smem constant byte address 0x4 - core index']
  #allocation1 [shape = 'u32[144,128]{1,0:T(1,128)}', space=vmem, size = 0x12000, scoped, tag = 'internal scratch']
  #allocation2 [shape = 'f32[1,128]{1,0:T(1,128)}', space=vmem, size = 0x200, scoped, tag = 'scratch operand']
  #allocation3 [shape = 'f32[1,128]{1,0:T(1,128)}', space=vmem, size = 0x200, scoped, tag = 'scratch operand']
  #allocation4 [shape = 'f32[1,1]{1,0:T(1,128)S(6)}', space=smem, size = 0x200, scoped, tag = 'scoped memory for tpu_custom_call.1']
  %s0 = inlined_call_operand.hbm [shape: f32[32,128], index: 0, kind: input, shape index: {}]
  %s1 = inlined_call_operand.vmem [shape: f32[1,128], index: 1, kind: input, shape index: {}]
  %s2 = inlined_call_operand.vmem [shape: f32[1,128], index: 2, kind: input, shape index: {}]
  %s3 = inlined_call_operand.<no memory space> [shape: f32[1,1], index: 3, kind: input, shape index: {}]
  %s4 = inlined_call_operand.hbm [shape: f32[1,128], index: 4, kind: output, shape index: {0}]
  %s5 = inlined_call_operand.hbm [shape: f32[1,128], index: 5, kind: output, shape index: {1}]
  %s6 = inlined_call_operand.hbm [shape: f32[1,128], index: 6, kind: output, shape index: {2}]
  %7 = xla_tuple %s4, %s5, %s6
  %s8 = sld [smem:[#allocation0]]
  $region81: #{tpu_custom_call.1} parent=0
    _
  %s10 = ssub.s32 1, %s8
  %s11 = scalar_select 0, %s10, %s8
  %12 = sst [smem:[#allocation4]] %s3
  $region1: #{tpu_custom_call.1} parent=0
    #allocation5 [shape = 'u8[8192]{0}', space=vmem, size = 0x2000, scoped, tag = 'input window, operand 0']
    #allocation6 [shape = 's32[2]{0}', space=sflag, size = 0x8, scoped, tag = 'scoped memory for tpu_custom_call.1']
    #allocation7 [shape = 's32[2]{0}', space=sflag, size = 0x8, scoped, tag = 'scoped memory for tpu_custom_call.1']
    #allocation8 [shape = 'u8[512]{0}', space=vmem, size = 0x400, scoped, tag = 'output window, operand 0, single buffered']
    #allocation9 [shape = 'u8[512]{0}', space=vmem, size = 0x400, scoped, tag = 'output window, operand 1, single buffered']
    #allocation10 [shape = 's32[1]{0}', space=sflag, size = 0x4, scoped, tag = 'scoped memory for tpu_custom_call.1']
    #allocation11 [shape = 'u8[512]{0}', space=vmem, size = 0x400, scoped, tag = 'output window, operand 2, single buffered']
    %13 = vsyncpa [#allocation6], 0
    %s14 = scalar_lea.sflag [#allocation6], 1
    %15 = vsyncpa %s14, 0
    %16 = vsyncpa [#allocation7], 0
    %17 = vsyncpa [#allocation10], 0
    loop: start=0, step=1, limit=6
    $region2: #{tpu_custom_call.1} parent=1 // loop_pre_header
      _
    $region3: #{tpu_custom_call.1} parent=1 // loop_header
      %s19 = sphi 0, %s23
      %p20 = scmp.ge.s32.totalorder %s19, 6
      %s26 = sphi 0, %s38
      %s27 = sphi 0, %s34
      %s28 = sphi 0, %s26
      %s29 = sphi 0, %s27
      %s30 = sphi 0, %s28
      %s31 = sphi 0, %s29
      %s43 = sphi 0, %s45
      %s46 = sphi 0, %s43
      %s47 = sphi 0, %s46
      %s63 = sphi 0, %s47
      %s69 = sphi 0, %s71
      %s72 = sphi 0, %s69
      %s73 = sphi 0, %s72
      %s89 = sphi 0, %s73
      %s95 = sphi 0, %s97
      %s98 = sphi 0, %s95
      %s99 = sphi 0, %s98
      %s115 = sphi 0, %s99
      %s119 = sphi 0, %s119
      %s121 = sphi 0, %s119
      %s122 = sphi 0, %s121
      %s136 = sphi 0, %s122
      %s142 = sphi 0, %s144
      %s145 = sphi 0, %s142
      %s146 = sphi 0, %s145
      %s162 = sphi 0, %s146
      %s168 = sphi 0, %s170
      %s171 = sphi 0, %s168
      %s172 = sphi 0, %s171
      %s188 = sphi 0, %s172
      %s194 = sphi 0, %s196
      %s197 = sphi 0, %s194
      %s198 = sphi 0, %s197
      %s214 = sphi 0, %s198
    $region4: #{tpu_custom_call.1} parent=1 // loop_header_branch
      %22 = sbr.rel (%p20) target = $region8
    $region5: #{tpu_custom_call.1} parent=1 // loop_body
      %s24 = ssub.s32 %s19, 1
      %s25 = ssub.s32 %s19, 2
      %s32 = sadd.s32 1, %s27
      %p33 = scmp.ge.s32.totalorder %s32, 4
      %s34 = scalar_select %p33, 0, %s32
      %s35 = sadd.s32 1, %s26
      %s36 = scalar_select %p33, %s35, %s26
      %p37 = scmp.ge.s32.totalorder %s36, 1
      %s38 = scalar_select %p37, 0, %s36
      %s39 = ssub.s32 %s27, %s34
      %s40 = ssub.s32 %s26, %s38
      %s41 = sor.u32 %s39, %s40
      %p42 = scmp.eq.s32.totalorder %s41, 0
      %s44 = sadd.s32 %s43, 1
      %s45 = scalar_select %p42, %s43, %s44
      %p48 = pneg %p42
      %p49 = scmp.eq.s32.totalorder %s19, 3
      %p50 = por %p48, %p49
      %p51 = scmp.ne.s32.totalorder %s43, %s46
      %p52 = scmp.eq.s32.totalorder %s19, 0
      %p53 = por %p51, %p52
      %p54 = scmp.ne.s32.totalorder %s43, %s46
      %p55 = scmp.eq.s32.totalorder %s24, 3
      %p56 = por %p54, %p55
      %p57 = scmp.ne.s32.totalorder %s46, %s47
      %p58 = scmp.eq.s32.totalorder %s24, 0
      %p59 = por %p57, %p58
      %p60 = scmp.ne.s32.totalorder %s46, %s47
      %p61 = scmp.eq.s32.totalorder %s25, 3
      %p62 = por %p60, %p61
      %p64 = scmp.ne.s32.totalorder %s47, %s63
      %p65 = scmp.eq.s32.totalorder %s25, 0
      %p66 = por %p64, %p65
      %s67 = ssub.s32 %s26, %s38
      %p68 = scmp.eq.s32.totalorder %s67, 0
      %s70 = sadd.s32 %s69, 1
      %s71 = scalar_select %p68, %s69, %s70
      %p74 = pneg %p68
      %p75 = scmp.eq.s32.totalorder %s19, 3
      %p76 = por %p74, %p75
      %p77 = scmp.ne.s32.totalorder %s69, %s72
      %p78 = scmp.eq.s32.totalorder %s19, 0
      %p79 = por %p77, %p78
      %p80 = scmp.ne.s32.totalorder %s69, %s72
      %p81 = scmp.eq.s32.totalorder %s24, 3
      %p82 = por %p80, %p81
      %p83 = scmp.ne.s32.totalorder %s72, %s73
      %p84 = scmp.eq.s32.totalorder %s24, 0
      %p85 = por %p83, %p84
      %p86 = scmp.ne.s32.totalorder %s72, %s73
      %p87 = scmp.eq.s32.totalorder %s25, 3
      %p88 = por %p86, %p87
      %p90 = scmp.ne.s32.totalorder %s73, %s89
      %p91 = scmp.eq.s32.totalorder %s25, 0
      %p92 = por %p90, %p91
      %s93 = ssub.s32 %s26, %s38
      %p94 = scmp.eq.s32.totalorder %s93, 0
      %s96 = sadd.s32 %s95, 1
      %s97 = scalar_select %p94, %s95, %s96
      %p100 = pneg %p94
      %p101 = scmp.eq.s32.totalorder %s19, 3
      %p102 = por %p100, %p101
      %p103 = scmp.ne.s32.totalorder %s95, %s98
      %p104 = scmp.eq.s32.totalorder %s19, 0
      %p105 = por %p103, %p104
      %p106 = scmp.ne.s32.totalorder %s95, %s98
      %p107 = scmp.eq.s32.totalorder %s24, 3
      %p108 = por %p106, %p107
      %p109 = scmp.ne.s32.totalorder %s98, %s99
      %p110 = scmp.eq.s32.totalorder %s24, 0
      %p111 = por %p109, %p110
      %p112 = scmp.ne.s32.totalorder %s98, %s99
      %p113 = scmp.eq.s32.totalorder %s25, 3
      %p114 = por %p112, %p113
      %p116 = scmp.ne.s32.totalorder %s99, %s115
      %p117 = scmp.eq.s32.totalorder %s25, 0
      %p118 = por %p116, %p117
      %s120 = sadd.s32 %s119, 1
      %p123 = scmp.eq.s32.totalorder %s19, 3
      %p124 = scmp.ne.s32.totalorder %s119, %s121
      %p125 = scmp.eq.s32.totalorder %s19, 0
      %p126 = por %p124, %p125
      %p127 = scmp.ne.s32.totalorder %s119, %s121
      %p128 = scmp.eq.s32.totalorder %s24, 3
      %p129 = por %p127, %p128
      %p130 = scmp.ne.s32.totalorder %s121, %s122
      %p131 = scmp.eq.s32.totalorder %s24, 0
      %p132 = por %p130, %p131
      %p133 = scmp.ne.s32.totalorder %s121, %s122
      %p134 = scmp.eq.s32.totalorder %s25, 3
      %p135 = por %p133, %p134
      %p137 = scmp.ne.s32.totalorder %s122, %s136
      %p138 = scmp.eq.s32.totalorder %s25, 0
      %p139 = por %p137, %p138
      %s140 = ssub.s32 %s26, %s38
      %p141 = scmp.eq.s32.totalorder %s140, 0
      %s143 = sadd.s32 %s142, 1
      %s144 = scalar_select %p141, %s142, %s143
      %p147 = pneg %p141
      %p148 = scmp.eq.s32.totalorder %s19, 3
      %p149 = por %p147, %p148
      %p150 = scmp.ne.s32.totalorder %s142, %s145
      %p151 = scmp.eq.s32.totalorder %s19, 0
      %p152 = por %p150, %p151
      %p153 = scmp.ne.s32.totalorder %s142, %s145
      %p154 = scmp.eq.s32.totalorder %s24, 3
      %p155 = por %p153, %p154
      %p156 = scmp.ne.s32.totalorder %s145, %s146
      %p157 = scmp.eq.s32.totalorder %s24, 0
      %p158 = por %p156, %p157
      %p159 = scmp.ne.s32.totalorder %s145, %s146
      %p160 = scmp.eq.s32.totalorder %s25, 3
      %p161 = por %p159, %p160
      %p163 = scmp.ne.s32.totalorder %s146, %s162
      %p164 = scmp.eq.s32.totalorder %s25, 0
      %p165 = por %p163, %p164
      %s166 = ssub.s32 %s26, %s38
      %p167 = scmp.eq.s32.totalorder %s166, 0
      %s169 = sadd.s32 %s168, 1
      %s170 = scalar_select %p167, %s168, %s169
      %p173 = pneg %p167
      %p174 = scmp.eq.s32.totalorder %s19, 3
      %p175 = por %p173, %p174
      %p176 = scmp.ne.s32.totalorder %s168, %s171
      %p177 = scmp.eq.s32.totalorder %s19, 0
      %p178 = por %p176, %p177
      %p179 = scmp.ne.s32.totalorder %s168, %s171
      %p180 = scmp.eq.s32.totalorder %s24, 3
      %p181 = por %p179, %p180
      %p182 = scmp.ne.s32.totalorder %s171, %s172
      %p183 = scmp.eq.s32.totalorder %s24, 0
      %p184 = por %p182, %p183
      %p185 = scmp.ne.s32.totalorder %s171, %s172
      %p186 = scmp.eq.s32.totalorder %s25, 3
      %p187 = por %p185, %p186
      %p189 = scmp.ne.s32.totalorder %s172, %s188
      %p190 = scmp.eq.s32.totalorder %s25, 0
      %p191 = por %p189, %p190
      %s192 = ssub.s32 %s26, %s38
      %p193 = scmp.eq.s32.totalorder %s192, 0
      %s195 = sadd.s32 %s194, 1
      %s196 = scalar_select %p193, %s194, %s195
      %p199 = pneg %p193
      %p200 = scmp.eq.s32.totalorder %s19, 3
      %p201 = por %p199, %p200
      %p202 = scmp.ne.s32.totalorder %s194, %s197
      %p203 = scmp.eq.s32.totalorder %s19, 0
      %p204 = por %p202, %p203
      %p205 = scmp.ne.s32.totalorder %s194, %s197
      %p206 = scmp.eq.s32.totalorder %s24, 3
      %p207 = por %p205, %p206
      %p208 = scmp.ne.s32.totalorder %s197, %s198
      %p209 = scmp.eq.s32.totalorder %s24, 0
      %p210 = por %p208, %p209
      %p211 = scmp.ne.s32.totalorder %s197, %s198
      %p212 = scmp.eq.s32.totalorder %s25, 3
      %p213 = por %p211, %p212
      %p215 = scmp.ne.s32.totalorder %s198, %s214
      %p216 = scmp.eq.s32.totalorder %s25, 0
      %p217 = por %p215, %p216
      %p218 = scmp.le.s32.totalorder 1, %s19
      %p219 = scmp.lt.s32.totalorder %s19, 5
      %p220 = pnand %p218, %p219
      %p221 = pneg %p220
      // Predicated region
      $region9: #{tpu_custom_call.1} parent=5 // pred_check
        _
      $region10: #{tpu_custom_call.1} parent=5 // pred_check_branch
        %223 = sbr.rel (%p220) target = $region12
      $region11: #{tpu_custom_call.1} parent=5 // pred_region
        %s224 = ssub.s32 %s19, 1
        // Predicated region
        $region13: #{tpu_custom_call.1} parent=11 // pred_check
          %p225 = pneg %p85
        $region14: #{tpu_custom_call.1} parent=11 // pred_check_branch
          %227 = sbr.rel (%p225) target = $region16
        $region15: #{tpu_custom_call.1} parent=11 // pred_region
          %p228 = scmp.lt.s32.totalorder %s28, 0
          %s229 = scalar_select %p228, %s28, 0
          %s230 = scalar_lea.vmem %s1, %s229
        $region16: #{tpu_custom_call.1} parent=11 // pred_fallthru
          _
        // Predicated region
        $region17: #{tpu_custom_call.1} parent=11 // pred_check
          %p231 = pneg %p111
        $region18: #{tpu_custom_call.1} parent=11 // pred_check_branch
          %233 = sbr.rel (%p231) target = $region20
        $region19: #{tpu_custom_call.1} parent=11 // pred_region
          %p234 = scmp.lt.s32.totalorder %s28, 0
          %s235 = scalar_select %p234, %s28, 0
          %s236 = scalar_lea.vmem %s2, %s235
        $region20: #{tpu_custom_call.1} parent=11 // pred_fallthru
          _
        // Predicated region
        $region21: #{tpu_custom_call.1} parent=11 // pred_check
          %p237 = pneg %p132
        $region22: #{tpu_custom_call.1} parent=11 // pred_check_branch
          %239 = sbr.rel (%p237) target = $region24
        $region23: #{tpu_custom_call.1} parent=11 // pred_region
          _
        $region24: #{tpu_custom_call.1} parent=11 // pred_fallthru
          _
      $region12: #{tpu_custom_call.1} parent=5 // pred_fallthru
        _
      %p240 = scmp.lt.s32.totalorder %s19, 4
      // Predicated region
      $region25: #{tpu_custom_call.1} parent=5 // pred_check
        %p241 = pneg %p240
      $region26: #{tpu_custom_call.1} parent=5 // pred_check_branch
        %243 = sbr.rel (%p241) target = $region28
      $region27: #{tpu_custom_call.1} parent=5 // pred_region
        // Predicated region
        $region29: #{tpu_custom_call.1} parent=27 // pred_check
          %p244 = pneg %p53
        $region30: #{tpu_custom_call.1} parent=27 // pred_check_branch
          %246 = sbr.rel (%p244) target = $region32
        $region31: #{tpu_custom_call.1} parent=27 // pred_region
          %s247 = sand.u32 %s43, 1
          %s248 = scalar_lea.sflag [#allocation6], %s247
          %s249 = sand.u32 %s43, 1
          %s250 = smul.addr %s249, 8
          %s251 = scalar_lea.vmem [#allocation5], %s250
          %s253 = ssub.s32 128, 128
          %254 = vsyncadd %s248, %s253
          %s255 = sadd.s32 %s26, %s27
          %s256 = smul.addr %s255, 128
          %s257 = scalar_lea.hbm %s0, %s256
          %s259 = sshll.u32 %s251, 4
          %s260 = int_to_ptr.vmem [resolvable:$true] %s259
          %262 = dma.hbm_to_vmem [thread:$0]  %s257, 128, %s260, %s248
        $region32: #{tpu_custom_call.1} parent=27 // pred_fallthru
          _
      $region28: #{tpu_custom_call.1} parent=5 // pred_fallthru
        _
      %p263 = scmp.le.s32.totalorder 1, %s19
      %p264 = scmp.lt.s32.totalorder %s19, 5
      %p265 = pnand %p263, %p264
      %p266 = pneg %p265
      // Predicated region
      $region33: #{tpu_custom_call.1} parent=5 // pred_check
        _
      $region34: #{tpu_custom_call.1} parent=5 // pred_check_branch
        %268 = sbr.rel (%p265) target = $region36
      $region35: #{tpu_custom_call.1} parent=5 // pred_region
        %s269 = ssub.s32 %s19, 1
        %s270 = sand.u32 %s46, 1
        %s271 = scalar_lea.sflag [#allocation6], %s270
        %s272 = sand.u32 %s46, 1
        %s273 = smul.addr %s272, 8
        %s274 = scalar_lea.vmem [#allocation5], %s273
        // Predicated region
        $region37: #{tpu_custom_call.1} parent=35 // pred_check
          %p275 = pneg %p59
        $region38: #{tpu_custom_call.1} parent=35 // pred_check_branch
          %277 = sbr.rel (%p275) target = $region40
        $region39: #{tpu_custom_call.1} parent=35 // pred_region
          %278 = dma.done %s271, 128
        $region40: #{tpu_custom_call.1} parent=35 // pred_fallthru
          _
        %s279 = sand.u32 %s46, 1
        %s280 = scalar_lea.sflag [#allocation6], %s279
        %s281 = sand.u32 %s46, 1
        %s282 = smul.addr %s281, 8
        %s283 = scalar_lea.vmem [#allocation5], %s282
        %p284 = pneg %p59
        %p285 = pneg %p56
        %p286 = scmp.lt.s32.totalorder %s28, 0
        %s287 = scalar_select %p286, %s28, 0
        %s288 = scalar_lea.vmem %s1, %s287
        %p289 = pneg %p85
        %p290 = pneg %p82
        %p291 = scmp.lt.s32.totalorder %s28, 0
        %s292 = scalar_select %p291, %s28, 0
        %s293 = scalar_lea.vmem %s2, %s292
        %p294 = pneg %p111
        %p295 = pneg %p108
        %p296 = pneg %p132
        %p297 = pneg %p129
        %p298 = pneg %p158
        %p299 = pneg %p155
        %p300 = pneg %p184
        %p301 = pneg %p181
        %p302 = pneg %p210
        %p303 = pneg %p207
        %p304 = scmp.lt.s32.totalorder %s28, 0
        %s305 = scalar_select %p304, %s28, 0
        %s306 = scalar_lea.vmem %s1, %s305
        %p307 = scmp.lt.s32.totalorder %s28, 0
        %s308 = scalar_select %p307, %s28, 0
        %s309 = scalar_lea.vmem %s2, %s308
        %v310 = vld [vmem:[%s274] sm:$0xff]
        %v311 = vrot.slane %v310, 4
        %v312 = vadd.f32 %v310, %v311
        %v313 = vrot.slane %v312, 2
        %v314 = vadd.f32 %v312, %v313
        %v315 = vrot.slane %v314, 1
        %v316 = vadd.f32 %v314, %v315
        %v317 = vrcp.pop 8.0
        %v318 = vmul.f32 %v316, %v317
        %v319 = vsub.f32 %v310, %v318
        %v320 = vmul.f32 %v319, %v319
        %v321 = vrot.slane %v320, 4
        %v322 = vadd.f32 %v320, %v321
        %v323 = vrot.slane %v322, 2
        %v324 = vadd.f32 %v322, %v323
        %v325 = vrot.slane %v324, 1
        %v326 = vadd.f32 %v324, %v325
        %p327 = scmp.eq.s32.totalorder %s29, 0
        // Predicated region
        $region41: #{tpu_custom_call.1} parent=35 // pred_check
          %p328 = pneg %p327
        $region42: #{tpu_custom_call.1} parent=35 // pred_check_branch
          %330 = sbr.rel (%p328) target = $region44
        $region43: #{tpu_custom_call.1} parent=35 // pred_region
          %331 = vst [vmem:[#allocation2] sm:$0x1] %v318
          %332 = vst [vmem:[#allocation3] sm:$0x1] %v326
        $region44: #{tpu_custom_call.1} parent=35 // pred_fallthru
          _
        %p333 = scmp.gt.s32.totalorder %s29, 0
        // Predicated region
        $region45: #{tpu_custom_call.1} parent=35 // pred_check
          %p334 = pneg %p333
        $region46: #{tpu_custom_call.1} parent=35 // pred_check_branch
          %336 = sbr.rel (%p334) target = $region48
        $region47: #{tpu_custom_call.1} parent=35 // pred_region
          %s337 = smul.u32 %s29, 8
          %s338 = scvt.s32.f32 %s337
          %s339 = sadd.f32 %s338, 8.0
          %v340 = vld [vmem:[#allocation2] sm:$0x1]
          %v341 = vsub.f32 %v318, %v340
          %v342 = vld [vmem:[#allocation3] sm:$0x1]
          %v343 = vadd.f32 %v342, %v326
          %v344 = vmul.f32 %v341, %v341
          %s345 = smul.f32 %s338, 8.0
          %v346 = vstv %s339
          %v347 = vrcp.pop %v346
          %s348 = vtos %v347
          %s349 = smul.f32 %s345, %s348
          %v350 = vstv %s349
          %v351 = vmul.f32 %v344, %v350
          %v352 = vadd.f32 %v343, %v351
          %353 = vst [vmem:[#allocation3] sm:$0x1] %v352
          %v354 = vld [vmem:[#allocation2] sm:$0x1]
          %v355 = vstv %s339
          %v356 = vrcp.pop %v355
          %s357 = vtos %v356
          %s358 = smul.f32 8.0, %s357
          %v359 = vstv %s358
          %v360 = vmul.f32 %v341, %v359
          %v361 = vadd.f32 %v354, %v360
          %362 = vst [vmem:[#allocation2] sm:$0x1] %v361
        $region48: #{tpu_custom_call.1} parent=35 // pred_fallthru
          _
        %p363 = scmp.eq.s32.totalorder %s29, 3
        // Predicated region
        $region49: #{tpu_custom_call.1} parent=35 // pred_check
          %p364 = pneg %p363
        $region50: #{tpu_custom_call.1} parent=35 // pred_check_branch
          %366 = sbr.rel (%p364) target = $region52
        $region51: #{tpu_custom_call.1} parent=35 // pred_region
          %v367 = vld [vmem:[#allocation2] sm:$0x1]
          %v368 = vld [vmem:[#allocation3] sm:$0x1]
          %v369 = vrcp.pop 32.0
          %v370 = vmul.f32 %v368, %v369
          %v371 = vld [vmem:[%s306] sm:$0x1]
          %v372 = vld [vmem:[%s309] sm:$0x1]
          %s373 = sld [smem:[#allocation4]]
          %v374 = vsub.f32 %v367, %v371
          %s375 = sadd.f32 %s373, 32.0
          %v376 = vstv %s375
          %v377 = vrcp.pop %v376
          %s378 = vtos %v377
          %s379 = smul.f32 32.0, %s378
          %v380 = vstv %s379
          %v381 = vmul.f32 %v374, %v380
          %v382 = vadd.f32 %v371, %v381
          %v383 = vstv %s373
          %v384 = vmul.f32 %v372, %v383
          %v385 = vmul.f32 %v370, 32.0
          %v386 = vadd.f32 %v384, %v385
          %v387 = vmul.f32 %v374, %v374
          %s388 = smul.f32 %s373, 32.0
          %v389 = vstv %s375
          %v390 = vrcp.pop %v389
          %s391 = vtos %v390
          %s392 = smul.f32 %s388, %s391
          %v393 = vstv %s392
          %v394 = vmul.f32 %v387, %v393
          %v395 = vadd.f32 %v386, %v394
          %v396 = vstv %s375
          %v397 = vrcp.pop %v396
          %v398 = vmul.f32 %v395, %v397
          %399 = vst [vmem:[#allocation8] sm:$0x1] %v382
          %400 = vst [vmem:[#allocation9] sm:$0x1] %v398
          %v401 = vadd.f32 %v398, 1e-05
          %v402 = vrsqrt.pop %v401
          %403 = vst [vmem:[#allocation11] sm:$0x1] %v402
        $region52: #{tpu_custom_call.1} parent=35 // pred_fallthru
          _
        // Predicated region
        $region53: #{tpu_custom_call.1} parent=35 // pred_check
          %p404 = pneg %p155
        $region54: #{tpu_custom_call.1} parent=35 // pred_check_branch
          %406 = sbr.rel (%p404) target = $region56
        $region55: #{tpu_custom_call.1} parent=35 // pred_region
          %s408 = ssub.s32 16, 16
          %409 = vsyncadd [#allocation7], %s408
          %s410 = smul.addr %s28, 16
          %s411 = scalar_lea.hbm %s4, %s410
          %s413 = sshll.u32 [#allocation8], 4
          %s414 = int_to_ptr.vmem [resolvable:$true] %s413
          %416 = dma.vmem_to_hbm [thread:$0]  %s414, 16, %s411, [#allocation7]
        $region56: #{tpu_custom_call.1} parent=35 // pred_fallthru
          _
        // Predicated region
        $region57: #{tpu_custom_call.1} parent=35 // pred_check
          %p417 = pneg %p181
        $region58: #{tpu_custom_call.1} parent=35 // pred_check_branch
          %419 = sbr.rel (%p417) target = $region60
        $region59: #{tpu_custom_call.1} parent=35 // pred_region
          %s421 = ssub.s32 16, 16
          %422 = vsyncadd [#allocation10], %s421
          %s423 = smul.addr %s28, 16
          %s424 = scalar_lea.hbm %s5, %s423
          %s426 = sshll.u32 [#allocation9], 4
          %s427 = int_to_ptr.vmem [resolvable:$true] %s426
          %429 = dma.vmem_to_hbm [thread:$0]  %s427, 16, %s424, [#allocation10]
        $region60: #{tpu_custom_call.1} parent=35 // pred_fallthru
          _
        // Predicated region
        $region61: #{tpu_custom_call.1} parent=35 // pred_check
          %p430 = pneg %p207
        $region62: #{tpu_custom_call.1} parent=35 // pred_check_branch
          %432 = sbr.rel (%p430) target = $region64
        $region63: #{tpu_custom_call.1} parent=35 // pred_region
          %s434 = ssub.s32 16, 16
          %435 = vsyncadd [#allocation10], %s434
          %s436 = smul.addr %s28, 16
          %s437 = scalar_lea.hbm %s6, %s436
          %s439 = sshll.u32 [#allocation11], 4
          %s440 = int_to_ptr.vmem [resolvable:$true] %s439
          %442 = dma.vmem_to_hbm [thread:$0]  %s440, 16, %s437, [#allocation10]
        $region64: #{tpu_custom_call.1} parent=35 // pred_fallthru
          _
        // Predicated region
        $region65: #{tpu_custom_call.1} parent=35 // pred_check
          %p443 = pneg %p155
        $region66: #{tpu_custom_call.1} parent=35 // pred_check_branch
          %445 = sbr.rel (%p443) target = $region68
        $region67: #{tpu_custom_call.1} parent=35 // pred_region
          %446 = dma.done [#allocation7], 16
        $region68: #{tpu_custom_call.1} parent=35 // pred_fallthru
          _
        // Predicated region
        $region69: #{tpu_custom_call.1} parent=35 // pred_check
          %p447 = pneg %p181
        $region70: #{tpu_custom_call.1} parent=35 // pred_check_branch
          %449 = sbr.rel (%p447) target = $region72
        $region71: #{tpu_custom_call.1} parent=35 // pred_region
          %450 = dma.done [#allocation10], 16
        $region72: #{tpu_custom_call.1} parent=35 // pred_fallthru
          _
        // Predicated region
        $region73: #{tpu_custom_call.1} parent=35 // pred_check
          %p451 = pneg %p207
        $region74: #{tpu_custom_call.1} parent=35 // pred_check_branch
          %453 = sbr.rel (%p451) target = $region76
        $region75: #{tpu_custom_call.1} parent=35 // pred_region
          %454 = dma.done [#allocation10], 16
        $region76: #{tpu_custom_call.1} parent=35 // pred_fallthru
          _
      $region36: #{tpu_custom_call.1} parent=5 // pred_fallthru
        _
      %p455 = scmp.le.s32.totalorder 2, %s19
      // Predicated region
      $region77: #{tpu_custom_call.1} parent=5 // pred_check
        %p456 = pneg %p455
      $region78: #{tpu_custom_call.1} parent=5 // pred_check_branch
        %458 = sbr.rel (%p456) target = $region80
      $region79: #{tpu_custom_call.1} parent=5 // pred_region
        %s459 = ssub.s32 %s19, 2
      $region80: #{tpu_custom_call.1} parent=5 // pred_fallthru
        _
    $region6: #{tpu_custom_call.1} parent=1 // loop_footer
      %s23 = sadd.s32 1, %s19
    $region7: #{tpu_custom_call.1} parent=1 // loop_footer_branch
      %18 = sbr.rel target = $region3
    $region8: #{tpu_custom_call.1} parent=1 // loop_exit
      _
    %460 = vsyncpa [#allocation6], 1
    %s461 = scalar_lea.sflag [#allocation6], 1
    %462 = vsyncpa %s461, 1
    %463 = vsyncpa [#allocation7], 1
    %s464 = scalar_lea.sflag [#allocation7], 1
    %465 = vsyncpa %s464, 1
    %466 = vsyncpa [#allocation10], 1

</llo_original>
